<compile_context>
chip_gen: v6e
topology: v6e:2x2x1
jax: 0.10.0
libtpu: 0.0.40
codegen_flags: <defaults>
</compile_context>

<pallas_src>
import functools
import math

import jax
import jax.numpy as jnp
from jax import lax
from jax.experimental import pallas as pl
from jax.experimental.pallas import tpu as pltpu


def _round_up(x: int, m: int) -> int:
    return (x + m - 1) // m * m


def _embedding_kernel(ids_ref, table_ref, out_ref, acc_ref, *, scale, tv):
    # ids_ref:   (T, 1)          int32 token ids for this token block (VMEM)
    # table_ref: (tv, d_model)   one vocab tile of the embedding table (VMEM)
    # out_ref:   (T, d_model)    scaled embedding rows
    # acc_ref:   (T, d_model)    float32 accumulator across vocab tiles
    v = pl.program_id(1)

    @pl.when(v == 0)
    def _():
        acc_ref[...] = jnp.zeros_like(acc_ref)

    ids = ids_ref[...]                                    # (T, 1)
    T = ids.shape[0]

    # Global vocab column indices covered by this table tile.
    col = lax.broadcasted_iota(jnp.int32, (T, tv), 1) + v * tv
    # One-hot gather on the MXU; sqrt(d_model) folded into the one-hot values.
    # Rows whose id lies outside this vocab tile contribute exactly zero.
    onehot = jnp.where(col == ids, scale, 0.0).astype(table_ref.dtype)
    acc_ref[...] += jnp.dot(
        onehot, table_ref[...], preferred_element_type=jnp.float32
    )

    @pl.when(v == pl.num_programs(1) - 1)
    def _():
        out_ref[...] = acc_ref[...].astype(out_ref.dtype)


def embeddings_forward(x, table, *, block_tokens: int = 256,
                       table_tile_bytes: int = 4 * 1024 * 1024):
    """Pallas equivalent of Embeddings.forward: table[x] * sqrt(d_model)."""
    B, S = x.shape
    vocab, d_model = table.shape
    n_tok = B * S
    scale = math.sqrt(float(d_model))

    # Token block: multiple of 8 (sublanes), capped by the padded token count
    # so tiny problems don't over-pad.
    T = _round_up(min(block_tokens, _round_up(n_tok, 8)), 8)
    n_tok_p = _round_up(n_tok, T)

    # Vocab tile: multiple of 128 (MXU contraction lanes), sized so one table
    # tile stays within ~table_tile_bytes of VMEM (Pallas double-buffers it).
    dtype_bytes = jnp.dtype(table.dtype).itemsize
    tv = (table_tile_bytes // max(1, d_model * dtype_bytes)) // 128 * 128
    tv = max(tv, 128)
    tv = min(tv, _round_up(vocab, 128))
    vocab_p = _round_up(vocab, tv)
    n_vocab_tiles = vocab_p // tv

    # Clamp ids (no OOB selection possible) and pad the token axis; padded
    # slots use id 0 and their outputs are sliced away below.
    ids = jnp.clip(x.reshape(-1).astype(jnp.int32), 0, vocab - 1)
    ids = jnp.pad(ids, (0, n_tok_p - n_tok)).reshape(n_tok_p, 1)
    table_p = jnp.pad(table, ((0, vocab_p - vocab), (0, 0)))

    kernel = functools.partial(_embedding_kernel, scale=scale, tv=tv)

    out_flat = pl.pallas_call(
        kernel,
        out_shape=jax.ShapeDtypeStruct((n_tok_p, d_model), table.dtype),
        grid_spec=pltpu.PrefetchScalarGridSpec(
            num_scalar_prefetch=0,
            grid=(n_tok_p // T, n_vocab_tiles),
            in_specs=[
                # Per-step block of token ids (constant across vocab tiles).
                pl.BlockSpec((T, 1), lambda i, v: (i, 0)),
                # One vocab tile of the table per inner step; for small vocab
                # this is a single grid-invariant block (stays VMEM-resident).
                pl.BlockSpec((tv, d_model), lambda i, v: (v, 0)),
            ],
            out_specs=pl.BlockSpec((T, d_model), lambda i, v: (i, 0)),
            scratch_shapes=[pltpu.VMEM((T, d_model), jnp.float32)],
        ),
        compiler_params=pltpu.CompilerParams(
            dimension_semantics=("parallel", "arbitrary")),
    )(ids, table_p)

    return out_flat[:n_tok].reshape(B, S, d_model)


if __name__ == "__main__":
    # Small, deterministic problem sizes consistent with the module.
    vocab = 50
    d_model = 128   # lane-dense embedding width
    batch, seq = 2, 8

    key = jax.random.PRNGKey(0)
    k_tbl, k_idx = jax.random.split(key)

    # Deterministic synthetic parameters (nn.Embedding(vocab, d_model).weight)
    table = jax.random.normal(k_tbl, (vocab, d_model), dtype=jnp.float32)
    # Deterministic integer token ids
    x = jax.random.randint(k_idx, (batch, seq), 0, vocab, dtype=jnp.int32)

    out = embeddings_forward(x, table)
    out = jax.block_until_ready(out)

    # Sanity check against a pure-JAX reference.
    ref = jnp.take(table, x, axis=0) * math.sqrt(float(d_model))
    assert out.shape == (batch, seq, d_model)
    assert jnp.allclose(out, ref, atol=1e-5, rtol=1e-5)

    print("KERNEL_OK")
</pallas_src>

<mosaic_0001>
module attributes {stable_mosaic.version = 11 : i64} {
  func.func @_embedding_kernel(%arg0: i32, %arg1: i32, %arg2: memref<16x1xi32, #tpu.memory_space<vmem>>, %arg3: memref<128x128xf32, #tpu.memory_space<vmem>>, %arg4: memref<16x128xf32, #tpu.memory_space<vmem>>, %arg5: memref<16x128xf32, #tpu.memory_space<vmem>>) attributes {dimension_semantics = [#tpu.dimension_semantics<parallel>, #tpu.dimension_semantics<arbitrary>], iteration_bounds = array<i64: 1, 1>, scalar_prefetch = 0 : i64, scratch_operands = 1 : i64, tpu.core_type = #tpu.core_type<tc>, window_params = [{transform_indices = @transform_0, window_bounds = array<i64: 16, 1>}, {transform_indices = @transform_1, window_bounds = array<i64: 128, 128>}, {transform_indices = @transform_2, window_bounds = array<i64: 16, 128>}]} {
    %c0_i32 = arith.constant 0 : i32
    %0 = arith.cmpi eq, %arg1, %c0_i32 : i32
    %1 = arith.extui %0 : i1 to i32
    %c0_i32_0 = arith.constant 0 : i32
    %2 = arith.cmpi ne, %1, %c0_i32_0 : i32
    scf.if %2 {
      %cst_12 = arith.constant 0.000000e+00 : f32
      %21 = vector.broadcast %cst_12 : f32 to vector<16x128xf32>
      %c0_13 = arith.constant 0 : index
      %c0_14 = arith.constant 0 : index
      %22 = vector.load %arg5[%c0_13, %c0_14] : memref<16x128xf32, #tpu.memory_space<vmem>>, vector<16x128xf32>
      tpu.vector_store %arg5[%c0_13, %c0_14], %21 {strides = array<i32>} : memref<16x128xf32, #tpu.memory_space<vmem>>, vector<16x128xf32>,
    } else {
    }
    %c0 = arith.constant 0 : index
    %c0_1 = arith.constant 0 : index
    %3 = vector.load %arg2[%c0, %c0_1] : memref<16x1xi32, #tpu.memory_space<vmem>>, vector<16x1xi32>
    %4 = tpu.iota {dimensions = array<i32: 1>} : vector<16x128xi32>
    %c128_i32 = arith.constant 128 : i32
    %5 = arith.muli %arg1, %c128_i32 : i32
    %6 = vector.broadcast %5 : i32 to vector<16x128xi32>
    %7 = arith.addi %4, %6 : vector<16x128xi32>
    %8 = vector.broadcast %3 : vector<16x1xi32> to vector<16x128xi32>
    %9 = arith.cmpi eq, %7, %8 : vector<16x128xi32>
    %cst = arith.constant 11.3137083 : f32
    %cst_2 = arith.constant 0.000000e+00 : f32
    %10 = vector.broadcast %cst : f32 to vector<16x128xf32>
    %11 = vector.broadcast %cst_2 : f32 to vector<16x128xf32>
    %12 = arith.select %9, %10, %11 : vector<16x128xi1>, vector<16x128xf32>
    %c0_3 = arith.constant 0 : index
    %c0_4 = arith.constant 0 : index
    %13 = vector.load %arg5[%c0_3, %c0_4] : memref<16x128xf32, #tpu.memory_space<vmem>>, vector<16x128xf32>
    %c0_5 = arith.constant 0 : index
    %c0_6 = arith.constant 0 : index
    %14 = vector.load %arg3[%c0_5, %c0_6] : memref<128x128xf32, #tpu.memory_space<vmem>>, vector<128x128xf32>
    %cst_7 = arith.constant dense<0.000000e+00> : vector<16x128xf32>
    %15 = tpu.matmul %12, %14, %cst_7 {dimension_numbers = #tpu.dot_dimension_numbers<[1], [0], [0], [1], [0, 0, 1, 1], [], []>} : vector<16x128xf32>, vector<128x128xf32>, vector<16x128xf32> -> vector<16x128xf32>
    %16 = arith.addf %13, %15 : vector<16x128xf32>
    %c0_8 = arith.constant 0 : index
    %c0_9 = arith.constant 0 : index
    %17 = vector.load %arg5[%c0_8, %c0_9] : memref<16x128xf32, #tpu.memory_space<vmem>>, vector<16x128xf32>
    tpu.vector_store %arg5[%c0_8, %c0_9], %16 {strides = array<i32>} : memref<16x128xf32, #tpu.memory_space<vmem>>, vector<16x128xf32>,
    %c0_i32_10 = arith.constant 0 : i32
    %18 = arith.cmpi eq, %arg1, %c0_i32_10 : i32
    %19 = arith.extui %18 : i1 to i32
    %c0_i32_11 = arith.constant 0 : i32
    %20 = arith.cmpi ne, %19, %c0_i32_11 : i32
    scf.if %20 {
      %c0_12 = arith.constant 0 : index
      %c0_13 = arith.constant 0 : index
      %21 = vector.load %arg5[%c0_12, %c0_13] : memref<16x128xf32, #tpu.memory_space<vmem>>, vector<16x128xf32>
      %c0_14 = arith.constant 0 : index
      %c0_15 = arith.constant 0 : index
      %22 = vector.load %arg4[%c0_14, %c0_15] : memref<16x128xf32, #tpu.memory_space<vmem>>, vector<16x128xf32>
      tpu.vector_store %arg4[%c0_14, %c0_15], %21 {strides = array<i32>} : memref<16x128xf32, #tpu.memory_space<vmem>>, vector<16x128xf32>,
    } else {
    }
    return
  }
  func.func @transform_0(%arg0: i32, %arg1: i32) -> (i32, i32) {
    %c0_i32 = arith.constant 0 : i32
    %c0_i32_0 = arith.constant 0 : i32
    return %arg0, %c0_i32 : i32, i32
  }
  func.func @transform_1(%arg0: i32, %arg1: i32) -> (i32, i32) {
    %c0_i32 = arith.constant 0 : i32
    %c0_i32_0 = arith.constant 0 : i32
    return %arg1, %c0_i32 : i32, i32
  }
  func.func @transform_2(%arg0: i32, %arg1: i32) -> (i32, i32) {
    %c0_i32 = arith.constant 0 : i32
    %c0_i32_0 = arith.constant 0 : i32
    return %arg0, %c0_i32 : i32, i32
  }
}

</mosaic_0001>

<llo_original>
// kernel: tpu_custom_call.1
$region0: #{tpu_custom_call.1}
  #allocation0 [shape = 'u32[]', space=smem, size = 0x4, offset = 0x4, fixed_abs, tag = 'smem constant byte address 0x4 - core index']
  #allocation1 [shape = 'u32[144,128]{1,0:T(1,128)}', space=vmem, size = 0x12000, scoped, tag = 'internal scratch']
  #allocation2 [shape = 'f32[16,128]{1,0:T(8,128)}', space=vmem, size = 0x2000, scoped, tag = 'scratch operand']
  %s0 = inlined_call_operand.vmem [shape: s32[16,1], index: 0, kind: input, shape index: {}]
  %s1 = inlined_call_operand.hbm [shape: f32[128,128], index: 1, kind: input, shape index: {}]
  %s2 = inlined_call_operand.hbm [shape: f32[16,128], index: 2, kind: output, shape index: {}]
  %s3 = sld [smem:[#allocation0]]
  $region30: #{tpu_custom_call.1} parent=0
    _
  %s5 = ssub.s32 1, %s3
  %s6 = scalar_select 0, %s5, %s3
  $region1: #{tpu_custom_call.1} parent=0
    #allocation3 [shape = 'u8[65536]{0}', space=vmem, size = 0x10000, scoped, tag = 'input window, operand 1, single buffered']
    #allocation4 [shape = 's32[1]{0}', space=sflag, size = 0x4, scoped, tag = 'scoped memory for tpu_custom_call.1']
    #allocation5 [shape = 's32[1]{0}', space=sflag, size = 0x4, scoped, tag = 'scoped memory for tpu_custom_call.1']
    #allocation6 [shape = 'u8[8192]{0}', space=vmem, size = 0x2000, scoped, tag = 'output window, operand 0, single buffered']
    %7 = vsyncpa [#allocation4], 0
    %8 = vsyncpa [#allocation5], 0
    // Predicated region
    $region2: #{tpu_custom_call.1} parent=1 // pred_check
      _
    $region3: #{tpu_custom_call.1} parent=1 // pred_check_branch
      %10 = sbr.rel (0) target = $region5
    $region4: #{tpu_custom_call.1} parent=1 // pred_region
      _
    $region5: #{tpu_custom_call.1} parent=1 // pred_fallthru
      _
    // Predicated region
    $region6: #{tpu_custom_call.1} parent=1 // pred_check
      _
    $region7: #{tpu_custom_call.1} parent=1 // pred_check_branch
      %12 = sbr.rel (0) target = $region9
    $region8: #{tpu_custom_call.1} parent=1 // pred_region
      %s14 = ssub.s32 2048, 2048
      %15 = vsyncadd [#allocation4], %s14
      %s16 = sshll.u32 [#allocation3], 4
      %s17 = int_to_ptr.vmem [resolvable:$true] %s16
      %22 = dma.hbm_to_vmem [thread:$0]  %s1, 2048, %s17, [#allocation4], 128, 128, 8
    $region9: #{tpu_custom_call.1} parent=1 // pred_fallthru
      _
    // Predicated region
    $region10: #{tpu_custom_call.1} parent=1 // pred_check
      _
    $region11: #{tpu_custom_call.1} parent=1 // pred_check_branch
      %24 = sbr.rel (0) target = $region13
    $region12: #{tpu_custom_call.1} parent=1 // pred_region
      %25 = dma.done [#allocation4], 2048
    $region13: #{tpu_custom_call.1} parent=1 // pred_fallthru
      _
    %p26 = scmp.eq.s32.totalorder 0, 0
    // Predicated region
    $region14: #{tpu_custom_call.1} parent=1 // pred_check
      %p27 = pneg %p26
    $region15: #{tpu_custom_call.1} parent=1 // pred_check_branch
      %29 = sbr.rel (%p27) target = $region17
    $region16: #{tpu_custom_call.1} parent=1 // pred_region
      %30 = vst [vmem:[#allocation2] sm:$0xff] 0.0
      %31 = vst [vmem:[#allocation2 + $0x8] sm:$0xff] 0.0
    $region17: #{tpu_custom_call.1} parent=1 // pred_fallthru
      _
    %v32 = vld [vmem:[%s0] sm:$0xff]
    %v33 = vld [vmem:[%s0 + $0x8] sm:$0xff]
    %v34 = vlaneseq
    %v35 = vand.u32 %v34, 127
    %s36 = smul.u32 0, 128
    %v37 = vstv %s36
    %v38 = vadd.s32 %v35, %v37
    %39 = vset.pattern.permute.xlu0 0
    %40 = vperm.xlu0 %39, %v32
    %v41 = vpop.permute.xlu0 %40
    %42 = vset.pattern.permute.xlu0 0
    %43 = vperm.xlu0 %42, %v33
    %v44 = vpop.permute.xlu0 %43
    %vm45 = vcmp.eq.s32.totalorder %v38, %v41
    %vm46 = vcmp.eq.s32.totalorder %v38, %v44
    %v47 = vsel %vm45, 11.313708, 0.0
    %v48 = vsel %vm46, 11.313708, 0.0
    %v49 = vld [vmem:[#allocation2] sm:$0xff]
    %v50 = vld [vmem:[#allocation2 + $0x8] sm:$0xff]
    %v51 = vld [vmem:[#allocation3] sm:$0xff]
    %v52 = vld [vmem:[#allocation3 + $0x8] sm:$0xff]
    %v53 = vld [vmem:[#allocation3 + $0x10] sm:$0xff]
    %v54 = vld [vmem:[#allocation3 + $0x18] sm:$0xff]
    %v55 = vld [vmem:[#allocation3 + $0x20] sm:$0xff]
    %v56 = vld [vmem:[#allocation3 + $0x28] sm:$0xff]
    %v57 = vld [vmem:[#allocation3 + $0x30] sm:$0xff]
    %v58 = vld [vmem:[#allocation3 + $0x38] sm:$0xff]
    %v59 = vld [vmem:[#allocation3 + $0x40] sm:$0xff]
    %v60 = vld [vmem:[#allocation3 + $0x48] sm:$0xff]
    %v61 = vld [vmem:[#allocation3 + $0x50] sm:$0xff]
    %v62 = vld [vmem:[#allocation3 + $0x58] sm:$0xff]
    %v63 = vld [vmem:[#allocation3 + $0x60] sm:$0xff]
    %v64 = vld [vmem:[#allocation3 + $0x68] sm:$0xff]
    %v65 = vld [vmem:[#allocation3 + $0x70] sm:$0xff]
    %v66 = vld [vmem:[#allocation3 + $0x78] sm:$0xff]
    %67 = vmatprep.subr.mxu0 0.0
    %68 = vmatpush1.msra.mxu0 %v66
    %69 = vmatprep.subr.mxu0 0.0
    %70 = vmatpush1.msra.mxu0 %v65
    %71 = vmatprep.subr.mxu0 0.0
    %72 = vmatpush1.msra.mxu0 %v64
    %73 = vmatprep.subr.mxu0 0.0
    %74 = vmatpush1.msra.mxu0 %v63
    %75 = vmatprep.subr.mxu0 0.0
    %76 = vmatpush1.msra.mxu0 %v62
    %77 = vmatprep.subr.mxu0 0.0
    %78 = vmatpush1.msra.mxu0 %v61
    %79 = vmatprep.subr.mxu0 0.0
    %80 = vmatpush1.msra.mxu0 %v60
    %81 = vmatprep.subr.mxu0 0.0
    %82 = vmatpush1.msra.mxu0 %v59
    %83 = vmatprep.subr.mxu0 0.0
    %84 = vmatpush1.msra.mxu0 %v58
    %85 = vmatprep.subr.mxu0 0.0
    %86 = vmatpush1.msra.mxu0 %v57
    %87 = vmatprep.subr.mxu0 0.0
    %88 = vmatpush1.msra.mxu0 %v56
    %89 = vmatprep.subr.mxu0 0.0
    %90 = vmatpush1.msra.mxu0 %v55
    %91 = vmatprep.subr.mxu0 0.0
    %92 = vmatpush1.msra.mxu0 %v54
    %93 = vmatprep.subr.mxu0 0.0
    %94 = vmatpush1.msra.mxu0 %v53
    %95 = vmatprep.subr.mxu0 0.0
    %96 = vmatpush1.msra.mxu0 %v52
    %97 = vmatprep.subr.mxu0 0.0
    %98 = vmatpush1.msra.mxu0 %v51
    %99 = vmatprep.subr.mxu0 0.0
    %100 = vmatpush2.msra.mxu0 0.0
    %101 = vmatprep.subr.mxu0 0.0
    %102 = vmatpush2.msra.mxu0 0.0
    %103 = vmatprep.subr.mxu0 0.0
    %104 = vmatpush2.msra.mxu0 0.0
    %105 = vmatprep.subr.mxu0 0.0
    %106 = vmatpush2.msra.mxu0 0.0
    %107 = vmatprep.subr.mxu0 0.0
    %108 = vmatpush2.msra.mxu0 0.0
    %109 = vmatprep.subr.mxu0 0.0
    %110 = vmatpush2.msra.mxu0 0.0
    %111 = vmatprep.subr.mxu0 0.0
    %112 = vmatpush2.msra.mxu0 0.0
    %113 = vmatprep.subr.mxu0 0.0
    %114 = vmatpush2.msra.mxu0 0.0
    %115 = vmatprep.subr.mxu0 0.0
    %116 = vmatpush2.msra.mxu0 0.0
    %117 = vmatprep.subr.mxu0 0.0
    %118 = vmatpush2.msra.mxu0 0.0
    %119 = vmatprep.subr.mxu0 0.0
    %120 = vmatpush2.msra.mxu0 0.0
    %121 = vmatprep.subr.mxu0 0.0
    %122 = vmatpush2.msra.mxu0 0.0
    %123 = vmatprep.subr.mxu0 0.0
    %124 = vmatpush2.msra.mxu0 0.0
    %125 = vmatprep.subr.mxu0 0.0
    %126 = vmatpush2.msra.mxu0 0.0
    %127 = vmatprep.subr.mxu0 0.0
    %128 = vmatpush2.msra.mxu0 0.0
    %129 = vmatprep.subr.mxu0 0.0
    %130 = vmatpush2.msra.mxu0 0.0
    %131 = vmatprep.mubr.f32.mxu0 0.0
    %132 = vmatmul.mubr.f32.gmra.mxu0 %v47
    %v133 = vpop.f32.mrf.mxu0
    %v134 = vadd.f32 0.0, %v133
    %v135 = vpop.f32.mrf.mxu0
    %136 = vmatprep.mubr.f32.mxu0 0.0
    %137 = vmatmul.mubr.f32.gmra.mxu0 %v48
    %v138 = vpop.f32.mrf.mxu0
    %v139 = vadd.f32 0.0, %v138
    %v140 = vpop.f32.mrf.mxu0
    %141 = vdwg.mxu0
    %v142 = vadd.f32 %v49, %v134
    %v143 = vadd.f32 %v50, %v139
    %144 = vst [vmem:[#allocation2] sm:$0xff] %v142
    %145 = vst [vmem:[#allocation2 + $0x8] sm:$0xff] %v143
    // Predicated region
    $region18: #{tpu_custom_call.1} parent=1 // pred_check
      %p146 = pneg %p26
    $region19: #{tpu_custom_call.1} parent=1 // pred_check_branch
      %148 = sbr.rel (%p146) target = $region21
    $region20: #{tpu_custom_call.1} parent=1 // pred_region
      %v149 = vld [vmem:[#allocation2] sm:$0xff]
      %v150 = vld [vmem:[#allocation2 + $0x8] sm:$0xff]
      %151 = vst [vmem:[#allocation6] sm:$0xff] %v149
      %152 = vst [vmem:[#allocation6 + $0x8] sm:$0xff] %v150
    $region21: #{tpu_custom_call.1} parent=1 // pred_fallthru
      _
    // Predicated region
    $region22: #{tpu_custom_call.1} parent=1 // pred_check
      _
    $region23: #{tpu_custom_call.1} parent=1 // pred_check_branch
      %154 = sbr.rel (0) target = $region25
    $region24: #{tpu_custom_call.1} parent=1 // pred_region
      %s156 = ssub.s32 256, 256
      %157 = vsyncadd [#allocation5], %s156
      %s158 = sshll.u32 [#allocation6], 4
      %s159 = int_to_ptr.vmem [resolvable:$true] %s158
      %164 = dma.vmem_to_hbm [thread:$0]  %s159, 256, %s2, [#allocation5], 128, 128, 8
    $region25: #{tpu_custom_call.1} parent=1 // pred_fallthru
      _
    // Predicated region
    $region26: #{tpu_custom_call.1} parent=1 // pred_check
      _
    $region27: #{tpu_custom_call.1} parent=1 // pred_check_branch
      %166 = sbr.rel (0) target = $region29
    $region28: #{tpu_custom_call.1} parent=1 // pred_region
      %167 = dma.done [#allocation5], 256
    $region29: #{tpu_custom_call.1} parent=1 // pred_fallthru
      _
    %168 = vsyncpa [#allocation4], 1
    %169 = vsyncpa [#allocation5], 1

</llo_original>
